<compile_context>
chip_gen: v7x
topology: tpu7x:2x2x1
jax: 0.10.0
libtpu: 0.0.40
codegen_flags: <defaults>
</compile_context>

<pallas_src>
import jax
import jax.numpy as jnp
from jax.experimental import pallas as pl
from jax.experimental.pallas import tpu as pltpu


def _p_z_kernel(y_ref, wm_ref, wv_ref, zm_ref, zv_ref):
    # y_ref:  (TB, K)   batch tile of mixture assignments
    # wm_ref: (K, Z)    means weight (pre-transposed), resident across grid steps
    # wv_ref: (K, Z)    vars weight (pre-transposed), resident across grid steps
    y = y_ref[...]
    zm = jnp.dot(y, wm_ref[...], preferred_element_type=jnp.float32)      # (TB, Z)
    zv_lin = jnp.dot(y, wv_ref[...], preferred_element_type=jnp.float32)  # (TB, Z)
    zm_ref[...] = zm.astype(zm_ref.dtype)
    zv_ref[...] = jax.nn.softplus(zv_lin).astype(zv_ref.dtype)


def _pick_block_b(B, cap=512):
    """Largest multiple of 8 that divides B and is <= cap (falls back to B)."""
    if B % 8 != 0:
        return B
    tb = min((min(B, cap) // 8) * 8, B)
    while B % tb != 0:
        tb -= 8
    return max(tb, 8)


def p_z_forward(y, means_weight, vars_weight, *, block_b=None):
    """Pallas implementation of P_z.forward.

    Args:
      y:            (B, K) float — mixture assignment (e.g. softmax / one-hot).
      means_weight: (Z, K) float — nn.Linear(K, Z, bias=False).weight layout.
      vars_weight:  (Z, K) float — nn.Linear(K, Z, bias=False).weight layout.
    Returns:
      (zm, zv), each (B, Z) float32, with zv = softplus(vars(y)).
    """
    B, K = y.shape
    Z = means_weight.shape[0]
    assert means_weight.shape == (Z, K) and vars_weight.shape == (Z, K)

    # Pre-transpose PyTorch-layout weights to (K, Z) so the kernel does a plain
    # y @ W matmul with the latent dim lane-dense on the output.
    wm = jnp.transpose(means_weight).astype(jnp.float32)
    wv = jnp.transpose(vars_weight).astype(jnp.float32)
    y = y.astype(jnp.float32)

    if block_b is None:
        block_b = _pick_block_b(B)
    assert B % block_b == 0, (B, block_b)
    grid = (B // block_b,)

    zm, zv = pl.pallas_call(
        _p_z_kernel,
        out_shape=(
            jax.ShapeDtypeStruct((B, Z), jnp.float32),
            jax.ShapeDtypeStruct((B, Z), jnp.float32),
        ),
        grid_spec=pltpu.PrefetchScalarGridSpec(
            num_scalar_prefetch=0,
            grid=grid,
            in_specs=[
                # Batch-tiled input: double-buffered DMA per grid step.
                pl.BlockSpec((block_b, K), lambda i: (i, 0)),
                # Weights: constant index_map -> DMA'd once, stay VMEM-resident.
                pl.BlockSpec((K, Z), lambda i: (0, 0)),
                pl.BlockSpec((K, Z), lambda i: (0, 0)),
            ],
            out_specs=(
                pl.BlockSpec((block_b, Z), lambda i: (i, 0)),
                pl.BlockSpec((block_b, Z), lambda i: (i, 0)),
            ),
        ),
        compiler_params=pltpu.CompilerParams(
            # Batch tiles are independent -> shard across TensorCores on v7x.
            dimension_semantics=("parallel",),
            # Explicit scoped-VMEM budget; safe on v5e/v6e/v7x, tiles here are tiny.
            vmem_limit_bytes=32 * 1024 * 1024,
        ),
    )(y, wm, wv)
    return zm, zv


def _reference(y, means_weight, vars_weight):
    """Pure-JAX reference of P_z.forward."""
    zm = y @ means_weight.T
    zv = jax.nn.softplus(y @ vars_weight.T)
    return zm, zv


if __name__ == "__main__":
    key = jax.random.PRNGKey(0)
    B = 16          # batch
    K = 10          # mixtures_count (module default)
    Z = 64          # latent_features (module default)

    k_y, k_m, k_v = jax.random.split(key, 3)
    # y: soft mixture assignment per sample (rows sum to 1), as q(y|x) would emit.
    y = jax.nn.softmax(jax.random.normal(k_y, (B, K), jnp.float32), axis=-1)
    means_w = 0.1 * jax.random.normal(k_m, (Z, K), jnp.float32)   # nn.Linear(K, Z).weight
    vars_w = 0.1 * jax.random.normal(k_v, (Z, K), jnp.float32)

    zm, zv = p_z_forward(y, means_w, vars_w, block_b=8)           # grid of 2 batch tiles
    zm, zv = jax.block_until_ready((zm, zv))

    zm_ref, zv_ref = _reference(y, means_w, vars_w)
    assert zm.shape == (B, Z) and zv.shape == (B, Z)
    assert jnp.allclose(zm, zm_ref, rtol=1e-5, atol=1e-5)
    assert jnp.allclose(zv, zv_ref, rtol=1e-5, atol=1e-5)
    assert bool(jnp.all(zv > 0.0))                                 # softplus output is positive

    print("KERNEL_OK")
</pallas_src>

<mosaic_0001>
module attributes {stable_mosaic.version = 11 : i64} {
  func.func @_p_z_kernel(%arg0: i32, %arg1: memref<8x10xf32, #tpu.memory_space<vmem>>, %arg2: memref<10x64xf32, #tpu.memory_space<vmem>>, %arg3: memref<10x64xf32, #tpu.memory_space<vmem>>, %arg4: memref<8x64xf32, #tpu.memory_space<vmem>>, %arg5: memref<8x64xf32, #tpu.memory_space<vmem>>) attributes {dimension_semantics = [#tpu.dimension_semantics<parallel>], iteration_bounds = array<i64: 2>, scalar_prefetch = 0 : i64, scratch_operands = 0 : i64, tpu.core_type = #tpu.core_type<tc>, window_params = [{transform_indices = @transform_0, window_bounds = array<i64: 8, 10>}, {pipeline_mode = #tpu.pipeline_mode<synchronous>, transform_indices = @transform_1, window_bounds = array<i64: 10, 64>}, {pipeline_mode = #tpu.pipeline_mode<synchronous>, transform_indices = @transform_2, window_bounds = array<i64: 10, 64>}, {transform_indices = @transform_3, window_bounds = array<i64: 8, 64>}, {transform_indices = @transform_4, window_bounds = array<i64: 8, 64>}]} {
    %c0 = arith.constant 0 : index
    %c0_0 = arith.constant 0 : index
    %0 = vector.load %arg1[%c0, %c0_0] : memref<8x10xf32, #tpu.memory_space<vmem>>, vector<8x10xf32>
    %c0_1 = arith.constant 0 : index
    %c0_2 = arith.constant 0 : index
    %1 = vector.load %arg2[%c0_1, %c0_2] : memref<10x64xf32, #tpu.memory_space<vmem>>, vector<10x64xf32>
    %cst = arith.constant dense<0.000000e+00> : vector<8x64xf32>
    %2 = tpu.matmul %0, %1, %cst {dimension_numbers = #tpu.dot_dimension_numbers<[1], [0], [0], [1], [0, 0, 1, 1], [], []>} : vector<8x10xf32>, vector<10x64xf32>, vector<8x64xf32> -> vector<8x64xf32>
    %c0_3 = arith.constant 0 : index
    %c0_4 = arith.constant 0 : index
    %3 = vector.load %arg3[%c0_3, %c0_4] : memref<10x64xf32, #tpu.memory_space<vmem>>, vector<10x64xf32>
    %cst_5 = arith.constant dense<0.000000e+00> : vector<8x64xf32>
    %4 = tpu.matmul %0, %3, %cst_5 {dimension_numbers = #tpu.dot_dimension_numbers<[1], [0], [0], [1], [0, 0, 1, 1], [], []>} : vector<8x10xf32>, vector<10x64xf32>, vector<8x64xf32> -> vector<8x64xf32>
    %c0_6 = arith.constant 0 : index
    %c0_7 = arith.constant 0 : index
    %5 = vector.load %arg4[%c0_6, %c0_7] : memref<8x64xf32, #tpu.memory_space<vmem>>, vector<8x64xf32>
    tpu.vector_store %arg4[%c0_6, %c0_7], %2 {strides = array<i32>} : memref<8x64xf32, #tpu.memory_space<vmem>>, vector<8x64xf32>,
    %cst_8 = arith.constant 0.000000e+00 : f32
    %6 = vector.broadcast %cst_8 : f32 to vector<8x64xf32>
    %7 = arith.maximumf %4, %6 : vector<8x64xf32>
    %8 = vector.broadcast %cst_8 : f32 to vector<8x64xf32>
    %9 = arith.subf %4, %8 : vector<8x64xf32>
    %10 = arith.cmpf one, %9, %9 : vector<8x64xf32>
    %11 = vector.broadcast %cst_8 : f32 to vector<8x64xf32>
    %12 = arith.addf %4, %11 : vector<8x64xf32>
    %13 = math.absf %9 : vector<8x64xf32>
    %cst_9 = arith.constant 0.000000e+00 : f32
    %14 = vector.broadcast %cst_9 : f32 to vector<8x64xf32>
    %15 = arith.subf %14, %13 : vector<8x64xf32>
    %16 = math.exp %15 : vector<8x64xf32>
    %17 = math.log1p %16 : vector<8x64xf32>
    %18 = arith.addf %7, %17 : vector<8x64xf32>
    %19 = arith.select %10, %12, %18 : vector<8x64xi1>, vector<8x64xf32>
    %c0_10 = arith.constant 0 : index
    %c0_11 = arith.constant 0 : index
    %20 = vector.load %arg5[%c0_10, %c0_11] : memref<8x64xf32, #tpu.memory_space<vmem>>, vector<8x64xf32>
    tpu.vector_store %arg5[%c0_10, %c0_11], %19 {strides = array<i32>} : memref<8x64xf32, #tpu.memory_space<vmem>>, vector<8x64xf32>,
    return
  }
  func.func @transform_0(%arg0: i32) -> (i32, i32) {
    %c0_i32 = arith.constant 0 : i32
    %c0_i32_0 = arith.constant 0 : i32
    return %arg0, %c0_i32 : i32, i32
  }
  func.func @transform_1(%arg0: i32) -> (i32, i32) {
    %c0_i32 = arith.constant 0 : i32
    %c0_i32_0 = arith.constant 0 : i32
    %c0_i32_1 = arith.constant 0 : i32
    return %c0_i32, %c0_i32_0 : i32, i32
  }
  func.func @transform_2(%arg0: i32) -> (i32, i32) {
    %c0_i32 = arith.constant 0 : i32
    %c0_i32_0 = arith.constant 0 : i32
    %c0_i32_1 = arith.constant 0 : i32
    return %c0_i32, %c0_i32_0 : i32, i32
  }
  func.func @transform_3(%arg0: i32) -> (i32, i32) {
    %c0_i32 = arith.constant 0 : i32
    %c0_i32_0 = arith.constant 0 : i32
    return %arg0, %c0_i32 : i32, i32
  }
  func.func @transform_4(%arg0: i32) -> (i32, i32) {
    %c0_i32 = arith.constant 0 : i32
    %c0_i32_0 = arith.constant 0 : i32
    return %arg0, %c0_i32 : i32, i32
  }
}

</mosaic_0001>

<llo_original>
// kernel: tpu_custom_call.1
$region0: #{tpu_custom_call.1}
  #allocation0 [shape = 'u32[]', space=smem, size = 0x4, offset = 0x4, fixed_abs, tag = 'smem constant byte address 0x4 - core index']
  #allocation1 [shape = 'u32[144,128]{1,0:T(1,128)}', space=vmem, size = 0x12000, scoped, tag = 'internal scratch']
  %s0 = inlined_call_operand.hbm [shape: f32[16,10], index: 0, kind: input, shape index: {}]
  %s1 = inlined_call_operand.hbm [shape: f32[10,64], index: 1, kind: input, shape index: {}]
  %s2 = inlined_call_operand.hbm [shape: f32[10,64], index: 2, kind: input, shape index: {}]
  %s3 = inlined_call_operand.hbm [shape: f32[16,64], index: 3, kind: output, shape index: {0}]
  %s4 = inlined_call_operand.hbm [shape: f32[16,64], index: 4, kind: output, shape index: {1}]
  %5 = xla_tuple %s3, %s4
  %s6 = sld [smem:[#allocation0]]
  $region65: #{tpu_custom_call.1} parent=0
    _
  %s8 = ssub.s32 1, %s6
  %s9 = scalar_select 0, %s8, %s6
  $region1: #{tpu_custom_call.1} parent=0
    #allocation2 [shape = 'u8[8192]{0}', space=vmem, size = 0x2000, scoped, tag = 'input window, operand 0']
    #allocation3 [shape = 's32[2]{0}', space=sflag, size = 0x8, scoped, tag = 'scoped memory for tpu_custom_call.1']
    #allocation4 [shape = 's32[2]{0}', space=sflag, size = 0x8, scoped, tag = 'scoped memory for tpu_custom_call.1']
    #allocation5 [shape = 'u8[8192]{0}', space=vmem, size = 0x2000, scoped, tag = 'input window, operand 1, single buffered']
    #allocation6 [shape = 's32[1]{0}', space=sflag, size = 0x4, scoped, tag = 'scoped memory for tpu_custom_call.1']
    #allocation7 [shape = 'u8[8192]{0}', space=vmem, size = 0x2000, scoped, tag = 'input window, operand 2, single buffered']
    #allocation8 [shape = 'u8[8192]{0}', space=vmem, size = 0x2000, scoped, tag = 'output window, operand 0']
    #allocation9 [shape = 'u8[8192]{0}', space=vmem, size = 0x2000, scoped, tag = 'output window, operand 1']
    #allocation10 [shape = 's32[2]{0}', space=sflag, size = 0x8, scoped, tag = 'scoped memory for tpu_custom_call.1']
    %10 = vsyncpa [#allocation3], 0
    %s11 = scalar_lea.sflag [#allocation3], 1
    %12 = vsyncpa %s11, 0
    %13 = vsyncpa [#allocation6], 0
    %14 = vsyncpa [#allocation4], 0
    %s15 = scalar_lea.sflag [#allocation4], 1
    %16 = vsyncpa %s15, 0
    %17 = vsyncpa [#allocation10], 0
    %s18 = scalar_lea.sflag [#allocation10], 1
    %19 = vsyncpa %s18, 0
    loop: start=0, step=1, limit=4
    $region2: #{tpu_custom_call.1} parent=1 // loop_pre_header
      _
    $region3: #{tpu_custom_call.1} parent=1 // loop_header
      %s21 = sphi 0, %s25
      %p22 = scmp.ge.s32.totalorder %s21, 4
      %s31 = sphi 0, %s33
      %s34 = sphi 0, %s31
      %s35 = sphi 0, %s34
      %s51 = sphi 0, %s35
      %s55 = sphi 0, %s55
      %s57 = sphi 0, %s55
      %s58 = sphi 0, %s57
      %s72 = sphi 0, %s58
      %s76 = sphi 0, %s76
      %s78 = sphi 0, %s76
      %s79 = sphi 0, %s78
      %s93 = sphi 0, %s79
      %s99 = sphi 0, %s101
      %s102 = sphi 0, %s99
      %s103 = sphi 0, %s102
      %s119 = sphi 0, %s103
      %s125 = sphi 0, %s127
      %s128 = sphi 0, %s125
      %s129 = sphi 0, %s128
      %s145 = sphi 0, %s129
    $region4: #{tpu_custom_call.1} parent=1 // loop_header_branch
      %24 = sbr.rel (%p22) target = $region8
    $region5: #{tpu_custom_call.1} parent=1 // loop_body
      %s26 = ssub.s32 %s21, 1
      %s27 = ssub.s32 %s21, 2
      %s28 = sadd.s32 %s21, 1
      %s29 = ssub.s32 %s21, %s28
      %p30 = scmp.eq.s32.totalorder %s29, 0
      %s32 = sadd.s32 %s31, 1
      %s33 = scalar_select %p30, %s31, %s32
      %p36 = pneg %p30
      %p37 = scmp.eq.s32.totalorder %s21, 1
      %p38 = por %p36, %p37
      %p39 = scmp.ne.s32.totalorder %s31, %s34
      %p40 = scmp.eq.s32.totalorder %s21, 0
      %p41 = por %p39, %p40
      %p42 = scmp.ne.s32.totalorder %s31, %s34
      %p43 = scmp.eq.s32.totalorder %s26, 1
      %p44 = por %p42, %p43
      %p45 = scmp.ne.s32.totalorder %s34, %s35
      %p46 = scmp.eq.s32.totalorder %s26, 0
      %p47 = por %p45, %p46
      %p48 = scmp.ne.s32.totalorder %s34, %s35
      %p49 = scmp.eq.s32.totalorder %s27, 1
      %p50 = por %p48, %p49
      %p52 = scmp.ne.s32.totalorder %s35, %s51
      %p53 = scmp.eq.s32.totalorder %s27, 0
      %p54 = por %p52, %p53
      %s56 = sadd.s32 %s55, 1
      %p59 = scmp.eq.s32.totalorder %s21, 1
      %p60 = scmp.ne.s32.totalorder %s55, %s57
      %p61 = scmp.eq.s32.totalorder %s21, 0
      %p62 = por %p60, %p61
      %p63 = scmp.ne.s32.totalorder %s55, %s57
      %p64 = scmp.eq.s32.totalorder %s26, 1
      %p65 = por %p63, %p64
      %p66 = scmp.ne.s32.totalorder %s57, %s58
      %p67 = scmp.eq.s32.totalorder %s26, 0
      %p68 = por %p66, %p67
      %p69 = scmp.ne.s32.totalorder %s57, %s58
      %p70 = scmp.eq.s32.totalorder %s27, 1
      %p71 = por %p69, %p70
      %p73 = scmp.ne.s32.totalorder %s58, %s72
      %p74 = scmp.eq.s32.totalorder %s27, 0
      %p75 = por %p73, %p74
      %s77 = sadd.s32 %s76, 1
      %p80 = scmp.eq.s32.totalorder %s21, 1
      %p81 = scmp.ne.s32.totalorder %s76, %s78
      %p82 = scmp.eq.s32.totalorder %s21, 0
      %p83 = por %p81, %p82
      %p84 = scmp.ne.s32.totalorder %s76, %s78
      %p85 = scmp.eq.s32.totalorder %s26, 1
      %p86 = por %p84, %p85
      %p87 = scmp.ne.s32.totalorder %s78, %s79
      %p88 = scmp.eq.s32.totalorder %s26, 0
      %p89 = por %p87, %p88
      %p90 = scmp.ne.s32.totalorder %s78, %s79
      %p91 = scmp.eq.s32.totalorder %s27, 1
      %p92 = por %p90, %p91
      %p94 = scmp.ne.s32.totalorder %s79, %s93
      %p95 = scmp.eq.s32.totalorder %s27, 0
      %p96 = por %p94, %p95
      %s97 = ssub.s32 %s21, %s28
      %p98 = scmp.eq.s32.totalorder %s97, 0
      %s100 = sadd.s32 %s99, 1
      %s101 = scalar_select %p98, %s99, %s100
      %p104 = pneg %p98
      %p105 = scmp.eq.s32.totalorder %s21, 1
      %p106 = por %p104, %p105
      %p107 = scmp.ne.s32.totalorder %s99, %s102
      %p108 = scmp.eq.s32.totalorder %s21, 0
      %p109 = por %p107, %p108
      %p110 = scmp.ne.s32.totalorder %s99, %s102
      %p111 = scmp.eq.s32.totalorder %s26, 1
      %p112 = por %p110, %p111
      %p113 = scmp.ne.s32.totalorder %s102, %s103
      %p114 = scmp.eq.s32.totalorder %s26, 0
      %p115 = por %p113, %p114
      %p116 = scmp.ne.s32.totalorder %s102, %s103
      %p117 = scmp.eq.s32.totalorder %s27, 1
      %p118 = por %p116, %p117
      %p120 = scmp.ne.s32.totalorder %s103, %s119
      %p121 = scmp.eq.s32.totalorder %s27, 0
      %p122 = por %p120, %p121
      %s123 = ssub.s32 %s21, %s28
      %p124 = scmp.eq.s32.totalorder %s123, 0
      %s126 = sadd.s32 %s125, 1
      %s127 = scalar_select %p124, %s125, %s126
      %p130 = pneg %p124
      %p131 = scmp.eq.s32.totalorder %s21, 1
      %p132 = por %p130, %p131
      %p133 = scmp.ne.s32.totalorder %s125, %s128
      %p134 = scmp.eq.s32.totalorder %s21, 0
      %p135 = por %p133, %p134
      %p136 = scmp.ne.s32.totalorder %s125, %s128
      %p137 = scmp.eq.s32.totalorder %s26, 1
      %p138 = por %p136, %p137
      %p139 = scmp.ne.s32.totalorder %s128, %s129
      %p140 = scmp.eq.s32.totalorder %s26, 0
      %p141 = por %p139, %p140
      %p142 = scmp.ne.s32.totalorder %s128, %s129
      %p143 = scmp.eq.s32.totalorder %s27, 1
      %p144 = por %p142, %p143
      %p146 = scmp.ne.s32.totalorder %s129, %s145
      %p147 = scmp.eq.s32.totalorder %s27, 0
      %p148 = por %p146, %p147
      %p149 = scmp.le.s32.totalorder 1, %s21
      %p150 = scmp.lt.s32.totalorder %s21, 3
      %p151 = pnand %p149, %p150
      %p152 = pneg %p151
      // Predicated region
      $region9: #{tpu_custom_call.1} parent=5 // pred_check
        _
      $region10: #{tpu_custom_call.1} parent=5 // pred_check_branch
        %154 = sbr.rel (%p151) target = $region12
      $region11: #{tpu_custom_call.1} parent=5 // pred_region
        %s155 = ssub.s32 %s21, 1
        // Predicated region
        $region13: #{tpu_custom_call.1} parent=11 // pred_check
          %p156 = pneg %p68
        $region14: #{tpu_custom_call.1} parent=11 // pred_check_branch
          %158 = sbr.rel (%p156) target = $region16
        $region15: #{tpu_custom_call.1} parent=11 // pred_region
          %s160 = ssub.s32 256, 256
          %161 = vsyncadd [#allocation6], %s160
          %s162 = sshll.u32 [#allocation5], 4
          %s163 = int_to_ptr.vmem [resolvable:$true] %s162
          %168 = dma.hbm_to_vmem [thread:$0]  %s1, 256, %s163, [#allocation6], 128, 128, 8
        $region16: #{tpu_custom_call.1} parent=11 // pred_fallthru
          _
        // Predicated region
        $region17: #{tpu_custom_call.1} parent=11 // pred_check
          %p169 = pneg %p89
        $region18: #{tpu_custom_call.1} parent=11 // pred_check_branch
          %171 = sbr.rel (%p169) target = $region20
        $region19: #{tpu_custom_call.1} parent=11 // pred_region
          %s173 = ssub.s32 256, 256
          %174 = vsyncadd [#allocation6], %s173
          %s175 = sshll.u32 [#allocation7], 4
          %s176 = int_to_ptr.vmem [resolvable:$true] %s175
          %181 = dma.hbm_to_vmem [thread:$0]  %s2, 256, %s176, [#allocation6], 128, 128, 8
        $region20: #{tpu_custom_call.1} parent=11 // pred_fallthru
          _
      $region12: #{tpu_custom_call.1} parent=5 // pred_fallthru
        _
      %p182 = scmp.lt.s32.totalorder %s21, 2
      // Predicated region
      $region21: #{tpu_custom_call.1} parent=5 // pred_check
        %p183 = pneg %p182
      $region22: #{tpu_custom_call.1} parent=5 // pred_check_branch
        %185 = sbr.rel (%p183) target = $region24
      $region23: #{tpu_custom_call.1} parent=5 // pred_region
        // Predicated region
        $region25: #{tpu_custom_call.1} parent=23 // pred_check
          %p186 = pneg %p41
        $region26: #{tpu_custom_call.1} parent=23 // pred_check_branch
          %188 = sbr.rel (%p186) target = $region28
        $region27: #{tpu_custom_call.1} parent=23 // pred_region
          %s189 = sand.u32 %s31, 1
          %s190 = scalar_lea.sflag [#allocation3], %s189
          %s191 = sand.u32 %s31, 1
          %s192 = smul.addr %s191, 8
          %s193 = scalar_lea.vmem [#allocation2], %s192
          %s195 = ssub.s32 128, 128
          %196 = vsyncadd %s190, %s195
          %s197 = smul.addr %s21, 128
          %s198 = scalar_lea.hbm %s0, %s197
          %s200 = sshll.u32 %s193, 4
          %s201 = int_to_ptr.vmem [resolvable:$true] %s200
          %203 = dma.hbm_to_vmem [thread:$0]  %s198, 128, %s201, %s190
        $region28: #{tpu_custom_call.1} parent=23 // pred_fallthru
          _
      $region24: #{tpu_custom_call.1} parent=5 // pred_fallthru
        _
      %p204 = scmp.le.s32.totalorder 1, %s21
      %p205 = scmp.lt.s32.totalorder %s21, 3
      %p206 = pnand %p204, %p205
      %p207 = pneg %p206
      // Predicated region
      $region29: #{tpu_custom_call.1} parent=5 // pred_check
        _
      $region30: #{tpu_custom_call.1} parent=5 // pred_check_branch
        %209 = sbr.rel (%p206) target = $region32
      $region31: #{tpu_custom_call.1} parent=5 // pred_region
        %s210 = ssub.s32 %s21, 1
        %s211 = sand.u32 %s34, 1
        %s212 = scalar_lea.sflag [#allocation3], %s211
        %s213 = sand.u32 %s34, 1
        %s214 = smul.addr %s213, 8
        %s215 = scalar_lea.vmem [#allocation2], %s214
        // Predicated region
        $region33: #{tpu_custom_call.1} parent=31 // pred_check
          %p216 = pneg %p47
        $region34: #{tpu_custom_call.1} parent=31 // pred_check_branch
          %218 = sbr.rel (%p216) target = $region36
        $region35: #{tpu_custom_call.1} parent=31 // pred_region
          %219 = dma.done %s212, 128
        $region36: #{tpu_custom_call.1} parent=31 // pred_fallthru
          _
        // Predicated region
        $region37: #{tpu_custom_call.1} parent=31 // pred_check
          %p220 = pneg %p68
        $region38: #{tpu_custom_call.1} parent=31 // pred_check_branch
          %222 = sbr.rel (%p220) target = $region40
        $region39: #{tpu_custom_call.1} parent=31 // pred_region
          %223 = dma.done [#allocation6], 256
        $region40: #{tpu_custom_call.1} parent=31 // pred_fallthru
          _
        // Predicated region
        $region41: #{tpu_custom_call.1} parent=31 // pred_check
          %p224 = pneg %p89
        $region42: #{tpu_custom_call.1} parent=31 // pred_check_branch
          %226 = sbr.rel (%p224) target = $region44
        $region43: #{tpu_custom_call.1} parent=31 // pred_region
          %227 = dma.done [#allocation6], 256
        $region44: #{tpu_custom_call.1} parent=31 // pred_fallthru
          _
        %s228 = sand.u32 %s34, 1
        %s229 = scalar_lea.sflag [#allocation3], %s228
        %s230 = sand.u32 %s34, 1
        %s231 = smul.addr %s230, 8
        %s232 = scalar_lea.vmem [#allocation2], %s231
        %p233 = pneg %p47
        %p234 = pneg %p44
        %p235 = pneg %p68
        %p236 = pneg %p65
        %p237 = pneg %p89
        %p238 = pneg %p86
        %p239 = pneg %p115
        %p240 = pneg %p112
        %s241 = sand.u32 %s102, 1
        %s242 = scalar_lea.sflag [#allocation4], %s241
        %s243 = sand.u32 %s102, 1
        %s244 = smul.addr %s243, 8
        %s245 = scalar_lea.vmem [#allocation8], %s244
        %p246 = pneg %p141
        %p247 = pneg %p138
        %s248 = sand.u32 %s128, 1
        %s249 = scalar_lea.sflag [#allocation10], %s248
        %s250 = sand.u32 %s128, 1
        %s251 = smul.addr %s250, 8
        %s252 = scalar_lea.vmem [#allocation9], %s251
        %v253 = vld [vmem:[%s215] sm:$0xff]
        %v254 = vld [vmem:[#allocation5] sm:$0xff]
        %v255 = vld [vmem:[#allocation5 + $0x8] sm:$0x3]
        %vm256 = vcmask 80896
        %v258 = vsel %vm256, %v253, 0
        %vm260 = vcmask 1041408
        %v262 = vsel %vm260, %v255, 0
        %264 = vmatprep.subr.mxu0 0.0
        %265 = vmatpush1.msra.mxu0 %v254
        %266 = vmatprep.subr.mxu0 0.0
        %267 = vmatpush1.msra.mxu0 %v262
        %268 = vmatprep.subr.mxu0 0.0
        %269 = vmatpush1.msra.mxu0 0.0
        %270 = vmatprep.subr.mxu0 0.0
        %271 = vmatpush1.msra.mxu0 0.0
        %272 = vmatprep.subr.mxu0 0.0
        %273 = vmatpush1.msra.mxu0 0.0
        %274 = vmatprep.subr.mxu0 0.0
        %275 = vmatpush1.msra.mxu0 0.0
        %276 = vmatprep.subr.mxu0 0.0
        %277 = vmatpush1.msra.mxu0 0.0
        %278 = vmatprep.subr.mxu0 0.0
        %279 = vmatpush1.msra.mxu0 0.0
        %280 = vmatprep.subr.mxu0 0.0
        %281 = vmatpush1.msra.mxu0 0.0
        %282 = vmatprep.subr.mxu0 0.0
        %283 = vmatpush1.msra.mxu0 0.0
        %284 = vmatprep.subr.mxu0 0.0
        %285 = vmatpush1.msra.mxu0 0.0
        %286 = vmatprep.subr.mxu0 0.0
        %287 = vmatpush1.msra.mxu0 0.0
        %288 = vmatprep.subr.mxu0 0.0
        %289 = vmatpush1.msra.mxu0 0.0
        %290 = vmatprep.subr.mxu0 0.0
        %291 = vmatpush1.msra.mxu0 0.0
        %292 = vmatprep.subr.mxu0 0.0
        %293 = vmatpush1.msra.mxu0 0.0
        %294 = vmatprep.subr.mxu0 0.0
        %295 = vmatpush1.msra.mxu0 0.0
        %296 = vmatprep.subr.mxu0 0.0
        %297 = vmatpush1.msra.mxu0 0.0
        %298 = vmatprep.subr.mxu0 0.0
        %299 = vmatpush1.msra.mxu0 0.0
        %300 = vmatprep.subr.mxu0 0.0
        %301 = vmatpush1.msra.mxu0 0.0
        %302 = vmatprep.subr.mxu0 0.0
        %303 = vmatpush1.msra.mxu0 0.0
        %304 = vmatprep.subr.mxu0 0.0
        %305 = vmatpush1.msra.mxu0 0.0
        %306 = vmatprep.subr.mxu0 0.0
        %307 = vmatpush1.msra.mxu0 0.0
        %308 = vmatprep.subr.mxu0 0.0
        %309 = vmatpush1.msra.mxu0 0.0
        %310 = vmatprep.subr.mxu0 0.0
        %311 = vmatpush1.msra.mxu0 0.0
        %312 = vmatprep.subr.mxu0 0.0
        %313 = vmatpush1.msra.mxu0 0.0
        %314 = vmatprep.subr.mxu0 0.0
        %315 = vmatpush1.msra.mxu0 0.0
        %316 = vmatprep.subr.mxu0 0.0
        %317 = vmatpush1.msra.mxu0 0.0
        %318 = vmatprep.subr.mxu0 0.0
        %319 = vmatpush1.msra.mxu0 0.0
        %320 = vmatprep.subr.mxu0 0.0
        %321 = vmatpush1.msra.mxu0 0.0
        %322 = vmatprep.subr.mxu0 0.0
        %323 = vmatpush1.msra.mxu0 0.0
        %324 = vmatprep.subr.mxu0 0.0
        %325 = vmatpush1.msra.mxu0 0.0
        %326 = vmatprep.subr.mxu0 0.0
        %327 = vmatpush1.msra.mxu0 0.0
        %328 = vmatprep.mubr.f32.mxu0 0.0
        %329 = vmatmul.mubr.f32.gmra.mrb[0].mxu0 %v258
        %v330 = vpop.f32.mrb[0].mxu0
        %v331 = vadd.f32 0.0, %v330
        %v332 = vpop.f32.mrb[0].mxu0
        %333 = vdwg.mxu0
        %v334 = vld [vmem:[#allocation7] sm:$0xff]
        %v335 = vld [vmem:[#allocation7 + $0x8] sm:$0x3]
        %v337 = vsel %vm260, %v335, 0
        %339 = vmatprep.subr.mxu0 0.0
        %340 = vmatpush1.msra.mxu0 %v334
        %341 = vmatprep.subr.mxu0 0.0
        %342 = vmatpush1.msra.mxu0 %v337
        %343 = vmatprep.subr.mxu0 0.0
        %344 = vmatpush1.msra.mxu0 0.0
        %345 = vmatprep.subr.mxu0 0.0
        %346 = vmatpush1.msra.mxu0 0.0
        %347 = vmatprep.subr.mxu0 0.0
        %348 = vmatpush1.msra.mxu0 0.0
        %349 = vmatprep.subr.mxu0 0.0
        %350 = vmatpush1.msra.mxu0 0.0
        %351 = vmatprep.subr.mxu0 0.0
        %352 = vmatpush1.msra.mxu0 0.0
        %353 = vmatprep.subr.mxu0 0.0
        %354 = vmatpush1.msra.mxu0 0.0
        %355 = vmatprep.subr.mxu0 0.0
        %356 = vmatpush1.msra.mxu0 0.0
        %357 = vmatprep.subr.mxu0 0.0
        %358 = vmatpush1.msra.mxu0 0.0
        %359 = vmatprep.subr.mxu0 0.0
        %360 = vmatpush1.msra.mxu0 0.0
        %361 = vmatprep.subr.mxu0 0.0
        %362 = vmatpush1.msra.mxu0 0.0
        %363 = vmatprep.subr.mxu0 0.0
        %364 = vmatpush1.msra.mxu0 0.0
        %365 = vmatprep.subr.mxu0 0.0
        %366 = vmatpush1.msra.mxu0 0.0
        %367 = vmatprep.subr.mxu0 0.0
        %368 = vmatpush1.msra.mxu0 0.0
        %369 = vmatprep.subr.mxu0 0.0
        %370 = vmatpush1.msra.mxu0 0.0
        %371 = vmatprep.subr.mxu0 0.0
        %372 = vmatpush1.msra.mxu0 0.0
        %373 = vmatprep.subr.mxu0 0.0
        %374 = vmatpush1.msra.mxu0 0.0
        %375 = vmatprep.subr.mxu0 0.0
        %376 = vmatpush1.msra.mxu0 0.0
        %377 = vmatprep.subr.mxu0 0.0
        %378 = vmatpush1.msra.mxu0 0.0
        %379 = vmatprep.subr.mxu0 0.0
        %380 = vmatpush1.msra.mxu0 0.0
        %381 = vmatprep.subr.mxu0 0.0
        %382 = vmatpush1.msra.mxu0 0.0
        %383 = vmatprep.subr.mxu0 0.0
        %384 = vmatpush1.msra.mxu0 0.0
        %385 = vmatprep.subr.mxu0 0.0
        %386 = vmatpush1.msra.mxu0 0.0
        %387 = vmatprep.subr.mxu0 0.0
        %388 = vmatpush1.msra.mxu0 0.0
        %389 = vmatprep.subr.mxu0 0.0
        %390 = vmatpush1.msra.mxu0 0.0
        %391 = vmatprep.subr.mxu0 0.0
        %392 = vmatpush1.msra.mxu0 0.0
        %393 = vmatprep.subr.mxu0 0.0
        %394 = vmatpush1.msra.mxu0 0.0
        %395 = vmatprep.subr.mxu0 0.0
        %396 = vmatpush1.msra.mxu0 0.0
        %397 = vmatprep.subr.mxu0 0.0
        %398 = vmatpush1.msra.mxu0 0.0
        %399 = vmatprep.subr.mxu0 0.0
        %400 = vmatpush1.msra.mxu0 0.0
        %401 = vmatprep.subr.mxu0 0.0
        %402 = vmatpush1.msra.mxu0 0.0
        %403 = vmatprep.mubr.f32.mxu0 0.0
        %404 = vmatmul.mubr.f32.gmra.mrb[0].mxu0 %v258
        %v405 = vpop.f32.mrb[0].mxu0
        %v406 = vadd.f32 0.0, %v405
        %v407 = vpop.f32.mrb[0].mxu0
        %408 = vdwg.mxu0
        %vm409 = vcmask 523264
        %410 = vst.msk [vmem:[%s245] sm:$0xff] %vm409, %v331
        %v411 = vmax.f32 %v406, 0.0
        %vm412 = vcmp.ne.f32.partialorder %v406, %v406
        %v413 = vadd.f32 %v406, 0.0
        %v414 = vand.u32 2147483647, %v406
        %v415 = vsub.f32 0.0, %v414
        %v416 = vmul.f32 %v415, 1.442695
        %v417 = vpow.pop %v416
        %v418 = vadd.f32 %v417, 1.0
        %v419 = vlog2.pop %v418
        %v420 = vmul.f32 %v419, 0.6931472
        %v421 = vmul.f32 -0.5, %v417
        %v422 = vadd.f32 %v421, 1.0
        %v423 = vmul.f32 %v422, %v417
        %v424 = vand.u32 2147483647, %v417
        %vm425 = vcmp.lt.f32.partialorder %v424, 0.0004427343
        %v426 = vsel %vm425, %v423, %v420
        %v427 = vadd.f32 %v411, %v426
        %v428 = vsel %vm412, %v413, %v427
        %429 = vst.msk [vmem:[%s252] sm:$0xff] %vm409, %v428
        %s430 = sand.u32 %s102, 1
        %s431 = scalar_lea.sflag [#allocation4], %s430
        %s432 = sand.u32 %s102, 1
        %s433 = smul.addr %s432, 8
        %s434 = scalar_lea.vmem [#allocation8], %s433
        %s435 = sand.u32 %s128, 1
        %s436 = scalar_lea.sflag [#allocation10], %s435
        %s437 = sand.u32 %s128, 1
        %s438 = smul.addr %s437, 8
        %s439 = scalar_lea.vmem [#allocation9], %s438
        // Predicated region
        $region45: #{tpu_custom_call.1} parent=31 // pred_check
          %p440 = pneg %p112
        $region46: #{tpu_custom_call.1} parent=31 // pred_check_branch
          %442 = sbr.rel (%p440) target = $region48
        $region47: #{tpu_custom_call.1} parent=31 // pred_region
          %s444 = ssub.s32 128, 128
          %445 = vsyncadd %s431, %s444
          %s446 = smul.addr %s26, 128
          %s447 = scalar_lea.hbm %s3, %s446
          %s449 = sshll.u32 %s434, 4
          %s450 = int_to_ptr.vmem [resolvable:$true] %s449
          %452 = dma.vmem_to_hbm [thread:$0]  %s450, 128, %s447, %s431
        $region48: #{tpu_custom_call.1} parent=31 // pred_fallthru
          _
        // Predicated region
        $region49: #{tpu_custom_call.1} parent=31 // pred_check
          %p453 = pneg %p138
        $region50: #{tpu_custom_call.1} parent=31 // pred_check_branch
          %455 = sbr.rel (%p453) target = $region52
        $region51: #{tpu_custom_call.1} parent=31 // pred_region
          %s457 = ssub.s32 128, 128
          %458 = vsyncadd %s436, %s457
          %s459 = smul.addr %s26, 128
          %s460 = scalar_lea.hbm %s4, %s459
          %s462 = sshll.u32 %s439, 4
          %s463 = int_to_ptr.vmem [resolvable:$true] %s462
          %465 = dma.vmem_to_hbm [thread:$0]  %s463, 128, %s460, %s436
        $region52: #{tpu_custom_call.1} parent=31 // pred_fallthru
          _
      $region32: #{tpu_custom_call.1} parent=5 // pred_fallthru
        _
      %p466 = scmp.le.s32.totalorder 2, %s21
      // Predicated region
      $region53: #{tpu_custom_call.1} parent=5 // pred_check
        %p467 = pneg %p466
      $region54: #{tpu_custom_call.1} parent=5 // pred_check_branch
        %469 = sbr.rel (%p467) target = $region56
      $region55: #{tpu_custom_call.1} parent=5 // pred_region
        %s470 = ssub.s32 %s21, 2
        // Predicated region
        $region57: #{tpu_custom_call.1} parent=55 // pred_check
          %p471 = pneg %p118
        $region58: #{tpu_custom_call.1} parent=55 // pred_check_branch
          %473 = sbr.rel (%p471) target = $region60
        $region59: #{tpu_custom_call.1} parent=55 // pred_region
          %s474 = sand.u32 %s103, 1
          %s475 = scalar_lea.sflag [#allocation4], %s474
          %s476 = sand.u32 %s103, 1
          %s477 = smul.addr %s476, 8
          %s478 = scalar_lea.vmem [#allocation8], %s477
          %479 = dma.done %s475, 128
        $region60: #{tpu_custom_call.1} parent=55 // pred_fallthru
          _
        // Predicated region
        $region61: #{tpu_custom_call.1} parent=55 // pred_check
          %p480 = pneg %p144
        $region62: #{tpu_custom_call.1} parent=55 // pred_check_branch
          %482 = sbr.rel (%p480) target = $region64
        $region63: #{tpu_custom_call.1} parent=55 // pred_region
          %s483 = sand.u32 %s129, 1
          %s484 = scalar_lea.sflag [#allocation10], %s483
          %s485 = sand.u32 %s129, 1
          %s486 = smul.addr %s485, 8
          %s487 = scalar_lea.vmem [#allocation9], %s486
          %488 = dma.done %s484, 128
        $region64: #{tpu_custom_call.1} parent=55 // pred_fallthru
          _
      $region56: #{tpu_custom_call.1} parent=5 // pred_fallthru
        _
    $region6: #{tpu_custom_call.1} parent=1 // loop_footer
      %s25 = sadd.s32 1, %s21
    $region7: #{tpu_custom_call.1} parent=1 // loop_footer_branch
      %20 = sbr.rel target = $region3
    $region8: #{tpu_custom_call.1} parent=1 // loop_exit
      _
    %489 = vsyncpa [#allocation3], 1
    %s490 = scalar_lea.sflag [#allocation3], 1
    %491 = vsyncpa %s490, 1
    %492 = vsyncpa [#allocation6], 1
    %493 = vsyncpa [#allocation4], 1
    %s494 = scalar_lea.sflag [#allocation4], 1
    %495 = vsyncpa %s494, 1
    %496 = vsyncpa [#allocation10], 1
    %s497 = scalar_lea.sflag [#allocation10], 1
    %498 = vsyncpa %s497, 1

</llo_original>
